<compile_context>
chip_gen: v6e
topology: v6e:2x2x1
jax: 0.10.0
libtpu: 0.0.40
codegen_flags: <defaults>
</compile_context>

<pallas_src>
import functools

import jax
import jax.numpy as jnp
from jax.experimental import pallas as pl
from jax.experimental.pallas import tpu as pltpu


def _gram_partial_kernel(feat_ref, out_ref, acc_ref, *, tk, kps, hw):
    # feat_ref: (C, tk)   native dtype, VMEM — one K-tile of the feature map
    # out_ref:  (1, C, C) f32, VMEM — unnormalized partial gram for this split
    # acc_ref:  (C, C)    f32, VMEM scratch accumulator
    p = pl.program_id(0)
    k = pl.program_id(1)

    @pl.when(k == 0)
    def _init():
        acc_ref[...] = jnp.zeros_like(acc_ref)

    g = p * kps + k          # global K-tile index handled by this step
    rem = hw - g * tk        # number of valid columns in this tile

    def _accumulate(f):
        # Partial gram f @ f.T — contract the H*W tile on both sides, f32 acc.
        # TODO(synk): verify with pl.lower_as_mlir that Mosaic does not emit a
        # per-tile XLU transpose that binds the vector-extended slot in the
        # compute-bound C>=512 bf16 case; if it does, pre-transpose the tile
        # once into a (tk, C) scratch outside the accumulate path.
        acc_ref[...] += jax.lax.dot_general(
            f, f,
            dimension_numbers=(((1,), (1,)), ((), ())),
            preferred_element_type=jnp.float32,
        )

    @pl.when(rem >= tk)      # full tile: no masking cost on the VPU
    def _full():
        _accumulate(feat_ref[...])

    @pl.when(rem < tk)       # partial / overshooting tile: zero undefined cols
    def _partial():
        f = feat_ref[...]
        col = jax.lax.broadcasted_iota(jnp.int32, f.shape, dimension=1)
        _accumulate(jnp.where(col < rem, f, jnp.zeros_like(f)))

    @pl.when(k == pl.num_programs(1) - 1)
    def _write():
        out_ref[0] = acc_ref[...]


def _vmem_capacity_bytes():
    try:
        return int(pltpu.get_tpu_info().vmem_capacity_bytes)
    except Exception:
        return 64 * 1024 * 1024  # conservative (v7x-sized) fallback


def _choose_tk(c, hw, itemsize):
    """K-tile: multiple of 128, sized from the per-generation VMEM budget."""
    cap = _vmem_capacity_bytes()
    # Budget for the double-buffered *pair* of feature tiles.
    pair_budget = 32 * 1024 * 1024 if cap >= 96 * 1024 * 1024 else 12 * 1024 * 1024
    tk_cap = max(128, (pair_budget // (2 * max(c, 1) * itemsize)) // 128 * 128)
    return int(tk_cap)


def gram_matrix(x, *, tk=None, num_splits=None):
    """Pallas gram matrix: (x.view(c, h*w) @ x.view(c, h*w).T) / (b*c*h*w)."""
    b, c, h, w = x.shape
    if b != 1:
        raise ValueError("reference StyleLoss uses input.view(c, h*w); requires b == 1")
    hw = h * w
    feats = x.reshape(c, hw)              # keep native dtype (bf16 stays bf16)
    itemsize = feats.dtype.itemsize

    if tk is None:
        tk = _choose_tk(c, hw, itemsize)
    if hw < 128:
        tk = hw                           # full last-dim block, always legal
    else:
        # multiple of 128, never larger than the largest in-bounds 128-multiple
        tk = int(min(max(128, (int(tk) // 128) * 128), (hw // 128) * 128))

    num_k = -(-hw // tk)                  # == pl.cdiv(hw, tk), no padding pass
    if num_splits is None:
        num_splits = 2 if num_k >= 2 else 1   # v7x: one HW half per TensorCore
    num_splits = int(max(1, min(num_splits, num_k)))
    kps = -(-num_k // num_splits)         # K tiles per split (overrun is masked)

    kernel = functools.partial(_gram_partial_kernel, tk=tk, kps=kps, hw=hw)

    vmem_needed = (2 * c * tk * itemsize  # double-buffered feature tiles
                   + 2 * c * c * 4        # (1,C,C) output block (double-buffered)
                   + c * c * 4            # f32 accumulator scratch
                   + (1 << 20))           # margin
    vmem_limit = int(max(vmem_needed, 16 * 1024 * 1024))

    cost = pl.CostEstimate(
        flops=2 * c * c * hw,
        transcendentals=0,
        bytes_accessed=c * hw * itemsize + num_splits * c * c * 4,
    )

    partials = pl.pallas_call(
        kernel,
        grid=(num_splits, kps),
        in_specs=[
            # Clamp the global tile index so the overrun step of an uneven
            # split never DMAs out of bounds (its contribution is fully masked
            # in-kernel because rem <= 0 there).
            pl.BlockSpec((c, tk),
                         lambda p, k: (0, jnp.minimum(p * kps + k, num_k - 1))),
        ],
        out_specs=pl.BlockSpec((1, c, c), lambda p, k: (p, 0, 0)),
        out_shape=jax.ShapeDtypeStruct((num_splits, c, c), jnp.float32),
        scratch_shapes=[pltpu.VMEM((c, c), jnp.float32)],
        compiler_params=pltpu.CompilerParams(
            dimension_semantics=("parallel", "arbitrary"),  # split HW halves / K reduction
            vmem_limit_bytes=vmem_limit,
        ),
        cost_estimate=cost,
    )(feats)

    # Tiny (C, C) epilogue in XLA: sum per-core partials, apply 1/(h*w*c*b).
    return jnp.sum(partials, axis=0) * (1.0 / float(b * c * h * w))


class StyleLoss:
    """JAX/Pallas equivalent of the PyTorch StyleLoss module (b == 1 only).

    Note: bf16 inputs compute the gram from bf16-rounded features (the torch
    reference computes in f32), so losses differ at ~1e-2 relative for bf16.
    """

    def __init__(self, target_feature, *, tk=None):
        self._tk = tk
        self.target = gram_matrix(target_feature, tk=tk)
        # F.mse_loss(target, target) == 0
        self.loss = jnp.float32(0.0)

    def __call__(self, x):
        G = gram_matrix(x, tk=self._tk)
        # (C, C) MSE is negligible; done in XLA to keep the kernel a pure
        # streaming gram reduction.
        self.loss = jnp.mean(jnp.square(G - self.target))
        return x  # forward returns the input unchanged


def _gram_ref(x):
    b, c, h, w = x.shape
    f = x.reshape(c, h * w).astype(jnp.float32)
    return (f @ f.T) / float(h * w * c * b)


if __name__ == "__main__":
    key = jax.random.PRNGKey(0)
    k1, k2, k3, k4 = jax.random.split(key, 4)

    # Case 1: small map (b=1, c=8, 16x16): single split, single K-step.
    tf1 = jax.random.normal(k1, (1, 8, 16, 16), dtype=jnp.float32)
    x1 = jax.random.normal(k2, (1, 8, 16, 16), dtype=jnp.float32)
    m1 = StyleLoss(tf1)
    out1 = jax.block_until_ready(m1(x1))
    loss1 = jax.block_until_ready(m1.loss)
    ref1 = jnp.mean((_gram_ref(x1) - _gram_ref(tf1)) ** 2)
    assert jnp.allclose(out1, x1), "forward must return the input unchanged"
    assert jnp.allclose(m1.target, _gram_ref(tf1), rtol=1e-5, atol=1e-5)
    assert jnp.allclose(loss1, ref1, rtol=1e-5, atol=1e-6), (loss1, ref1)

    # Case 2: H*W = 1089 (not a multiple of 128), forced tk=128 -> 2 splits x
    # 5 K-steps each with an uneven split: exercises the in-kernel partial-tile
    # mask AND the fully-masked overrun step of the second split.
    tf2 = jax.random.normal(k3, (1, 16, 33, 33), dtype=jnp.float32)
    x2 = jax.random.normal(k4, (1, 16, 33, 33), dtype=jnp.float32)
    m2 = StyleLoss(tf2, tk=128)
    out2 = jax.block_until_ready(m2(x2))
    loss2 = jax.block_until_ready(m2.loss)
    ref2 = jnp.mean((_gram_ref(x2) - _gram_ref(tf2)) ** 2)
    assert jnp.allclose(out2, x2), "forward must return the input unchanged"
    assert jnp.allclose(m2.target, _gram_ref(tf2), rtol=1e-5, atol=1e-5)
    assert jnp.allclose(loss2, ref2, rtol=1e-5, atol=1e-6), (loss2, ref2)

    # Case 2b: same data, auto tk (1024) -> 2 splits x 1 K-step, partial tail.
    m2b = StyleLoss(tf2)
    jax.block_until_ready(m2b(x2))
    loss2b = jax.block_until_ready(m2b.loss)
    assert jnp.allclose(loss2b, ref2, rtol=1e-5, atol=1e-6), (loss2b, ref2)

    # Case 3: bf16 features fed straight to the MXU (f32 accumulation).
    tf3 = tf2.astype(jnp.bfloat16)
    x3 = x2.astype(jnp.bfloat16)
    m3 = StyleLoss(tf3, tk=128)
    out3 = jax.block_until_ready(m3(x3))
    loss3 = jax.block_until_ready(m3.loss)
    ref3 = jnp.mean((_gram_ref(x3) - _gram_ref(tf3)) ** 2)
    assert jnp.allclose(loss3, ref3, rtol=2e-2, atol=1e-6), (loss3, ref3)

    print("KERNEL_OK")
</pallas_src>

<mosaic_0001>
module attributes {stable_mosaic.version = 11 : i64} {
  func.func @_gram_partial_kernel(%arg0: i32, %arg1: i32, %arg2: memref<8x256xf32, #tpu.memory_space<vmem>>, %arg3: memref<1x8x8xf32, #tpu.memory_space<vmem>>, %arg4: memref<8x8xf32, #tpu.memory_space<vmem>>) attributes {dimension_semantics = [#tpu.dimension_semantics<parallel>, #tpu.dimension_semantics<arbitrary>], iteration_bounds = array<i64: 1, 1>, scalar_prefetch = 0 : i64, scratch_operands = 1 : i64, tpu.core_type = #tpu.core_type<tc>, window_params = [{transform_indices = @transform_0, window_bounds = array<i64: 8, 256>}, {transform_indices = @transform_1, window_bounds = array<i64: 1, 8, 8>}]} {
    %c0_i32 = arith.constant 0 : i32
    %0 = arith.cmpi eq, %arg1, %c0_i32 : i32
    %1 = arith.extui %0 : i1 to i32
    %c0_i32_0 = arith.constant 0 : i32
    %2 = arith.cmpi ne, %1, %c0_i32_0 : i32
    scf.if %2 {
      %cst = arith.constant 0.000000e+00 : f32
      %16 = vector.broadcast %cst : f32 to vector<8x8xf32>
      %c0 = arith.constant 0 : index
      %c0_8 = arith.constant 0 : index
      %17 = vector.load %arg4[%c0, %c0_8] : memref<8x8xf32, #tpu.memory_space<vmem>>, vector<8x8xf32>
      tpu.vector_store %arg4[%c0, %c0_8], %16 {strides = array<i32>} : memref<8x8xf32, #tpu.memory_space<vmem>>, vector<8x8xf32>,
    } else {
    }
    %c1_i32 = arith.constant 1 : i32
    %3 = arith.muli %arg0, %c1_i32 : i32
    %4 = arith.addi %3, %arg1 : i32
    %c256_i32 = arith.constant 256 : i32
    %5 = arith.muli %4, %c256_i32 : i32
    %c256_i32_1 = arith.constant 256 : i32
    %6 = arith.subi %c256_i32_1, %5 : i32
    %c256_i32_2 = arith.constant 256 : i32
    %7 = arith.cmpi sge, %6, %c256_i32_2 : i32
    %8 = arith.extui %7 : i1 to i32
    %c0_i32_3 = arith.constant 0 : i32
    %9 = arith.cmpi ne, %8, %c0_i32_3 : i32
    scf.if %9 {
      %c0 = arith.constant 0 : index
      %c0_8 = arith.constant 0 : index
      %16 = vector.load %arg2[%c0, %c0_8] : memref<8x256xf32, #tpu.memory_space<vmem>>, vector<8x256xf32>
      %c0_9 = arith.constant 0 : index
      %c0_10 = arith.constant 0 : index
      %17 = vector.load %arg4[%c0_9, %c0_10] : memref<8x8xf32, #tpu.memory_space<vmem>>, vector<8x8xf32>
      %cst = arith.constant dense<0.000000e+00> : vector<8x8xf32>
      %18 = tpu.matmul %16, %16, %cst {dimension_numbers = #tpu.dot_dimension_numbers<[1], [1], [0], [0], [0, 0, 1, 0], [], []>} : vector<8x256xf32>, vector<8x256xf32>, vector<8x8xf32> -> vector<8x8xf32>
      %19 = arith.addf %17, %18 : vector<8x8xf32>
      %c0_11 = arith.constant 0 : index
      %c0_12 = arith.constant 0 : index
      %20 = vector.load %arg4[%c0_11, %c0_12] : memref<8x8xf32, #tpu.memory_space<vmem>>, vector<8x8xf32>
      tpu.vector_store %arg4[%c0_11, %c0_12], %19 {strides = array<i32>} : memref<8x8xf32, #tpu.memory_space<vmem>>, vector<8x8xf32>,
    } else {
    }
    %c256_i32_4 = arith.constant 256 : i32
    %10 = arith.cmpi slt, %6, %c256_i32_4 : i32
    %11 = arith.extui %10 : i1 to i32
    %c0_i32_5 = arith.constant 0 : i32
    %12 = arith.cmpi ne, %11, %c0_i32_5 : i32
    scf.if %12 {
      %c0 = arith.constant 0 : index
      %c0_8 = arith.constant 0 : index
      %16 = vector.load %arg2[%c0, %c0_8] : memref<8x256xf32, #tpu.memory_space<vmem>>, vector<8x256xf32>
      %17 = tpu.iota {dimensions = array<i32: 1>} : vector<8x256xi32>
      %18 = vector.broadcast %6 : i32 to vector<8x256xi32>
      %19 = arith.cmpi slt, %17, %18 : vector<8x256xi32>
      %cst = arith.constant 0.000000e+00 : f32
      %20 = vector.broadcast %cst : f32 to vector<8x256xf32>
      %21 = arith.select %19, %16, %20 : vector<8x256xi1>, vector<8x256xf32>
      %c0_9 = arith.constant 0 : index
      %c0_10 = arith.constant 0 : index
      %22 = vector.load %arg4[%c0_9, %c0_10] : memref<8x8xf32, #tpu.memory_space<vmem>>, vector<8x8xf32>
      %cst_11 = arith.constant dense<0.000000e+00> : vector<8x8xf32>
      %23 = tpu.matmul %21, %21, %cst_11 {dimension_numbers = #tpu.dot_dimension_numbers<[1], [1], [0], [0], [0, 0, 1, 0], [], []>} : vector<8x256xf32>, vector<8x256xf32>, vector<8x8xf32> -> vector<8x8xf32>
      %24 = arith.addf %22, %23 : vector<8x8xf32>
      %c0_12 = arith.constant 0 : index
      %c0_13 = arith.constant 0 : index
      %25 = vector.load %arg4[%c0_12, %c0_13] : memref<8x8xf32, #tpu.memory_space<vmem>>, vector<8x8xf32>
      tpu.vector_store %arg4[%c0_12, %c0_13], %24 {strides = array<i32>} : memref<8x8xf32, #tpu.memory_space<vmem>>, vector<8x8xf32>,
    } else {
    }
    %c0_i32_6 = arith.constant 0 : i32
    %13 = arith.cmpi eq, %arg1, %c0_i32_6 : i32
    %14 = arith.extui %13 : i1 to i32
    %c0_i32_7 = arith.constant 0 : i32
    %15 = arith.cmpi ne, %14, %c0_i32_7 : i32
    scf.if %15 {
      %c0 = arith.constant 0 : index
      %c0_8 = arith.constant 0 : index
      %16 = vector.load %arg4[%c0, %c0_8] : memref<8x8xf32, #tpu.memory_space<vmem>>, vector<8x8xf32>
      %c0_9 = arith.constant 0 : index
      %c0_10 = arith.constant 0 : index
      %c0_11 = arith.constant 0 : index
      %17 = vector.load %arg3[%c0_9, %c0_10, %c0_11] : memref<1x8x8xf32, #tpu.memory_space<vmem>>, vector<1x8x8xf32>
      %18 = vector.shape_cast %17 : vector<1x8x8xf32> to vector<8x8xf32>
      %19 = vector.shape_cast %16 : vector<8x8xf32> to vector<1x8x8xf32>
      tpu.vector_store %arg3[%c0_9, %c0_10, %c0_11], %19 {strides = array<i32>} : memref<1x8x8xf32, #tpu.memory_space<vmem>>, vector<1x8x8xf32>,
    } else {
    }
    return
  }
  func.func @transform_0(%arg0: i32, %arg1: i32) -> (i32, i32) {
    %c1_i32 = arith.constant 1 : i32
    %0 = arith.muli %arg0, %c1_i32 : i32
    %1 = arith.addi %0, %arg1 : i32
    %c0_i32 = arith.constant 0 : i32
    %2 = arith.minsi %1, %c0_i32 : i32
    %c0_i32_0 = arith.constant 0 : i32
    %c0_i32_1 = arith.constant 0 : i32
    return %c0_i32_0, %2 : i32, i32
  }
  func.func @transform_1(%arg0: i32, %arg1: i32) -> (i32, i32, i32) {
    %c0_i32 = arith.constant 0 : i32
    %c0_i32_0 = arith.constant 0 : i32
    %c0_i32_1 = arith.constant 0 : i32
    return %arg0, %c0_i32, %c0_i32_0 : i32, i32, i32
  }
}

</mosaic_0001>

<llo_original>
// kernel: tpu_custom_call.1
$region0: #{tpu_custom_call.1}
  #allocation0 [shape = 'u32[]', space=smem, size = 0x4, offset = 0x4, fixed_abs, tag = 'smem constant byte address 0x4 - core index']
  #allocation1 [shape = 'u32[144,128]{1,0:T(1,128)}', space=vmem, size = 0x12000, scoped, tag = 'internal scratch']
  #allocation2 [shape = 'f32[8,8]{1,0:T(8,128)}', space=vmem, size = 0x1000, scoped, tag = 'scratch operand']
  %s0 = inlined_call_operand.hbm [shape: f32[8,256], index: 0, kind: input, shape index: {}]
  %s1 = inlined_call_operand.hbm [shape: f32[1,8,8], index: 1, kind: output, shape index: {}]
  %s2 = sld [smem:[#allocation0]]
  $region34: #{tpu_custom_call.1} parent=0
    _
  %s4 = ssub.s32 1, %s2
  %s5 = scalar_select 0, %s4, %s2
  $region1: #{tpu_custom_call.1} parent=0
    #allocation3 [shape = 'u8[8192]{0}', space=vmem, size = 0x2000, scoped, tag = 'input window, operand 0, single buffered']
    #allocation4 [shape = 's32[1]{0}', space=sflag, size = 0x4, scoped, tag = 'scoped memory for tpu_custom_call.1']
    #allocation5 [shape = 's32[1]{0}', space=sflag, size = 0x4, scoped, tag = 'scoped memory for tpu_custom_call.1']
    #allocation6 [shape = 'u8[4096]{0}', space=vmem, size = 0x1000, scoped, tag = 'output window, operand 0, single buffered']
    %6 = vsyncpa [#allocation4], 0
    %7 = vsyncpa [#allocation5], 0
    // Predicated region
    $region2: #{tpu_custom_call.1} parent=1 // pred_check
      _
    $region3: #{tpu_custom_call.1} parent=1 // pred_check_branch
      %9 = sbr.rel (0) target = $region5
    $region4: #{tpu_custom_call.1} parent=1 // pred_region
      %s10 = sadd.s32 0, 0
      %p11 = scmp.lt.s32.totalorder %s10, 0
      %s12 = scalar_select %p11, %s10, 0
      %s13 = smul.u32 2, %s12
      %s15 = ssub.s32 256, 256
      %16 = vsyncadd [#allocation4], %s15
      %s17 = smul.addr %s13, 128
      %s18 = scalar_lea.hbm %s0, %s17
      %s20 = sshll.u32 [#allocation3], 4
      %s21 = int_to_ptr.vmem [resolvable:$true] %s20
      %23 = dma.hbm_to_vmem [thread:$0]  %s18, 256, %s21, [#allocation4]
    $region5: #{tpu_custom_call.1} parent=1 // pred_fallthru
      _
    // Predicated region
    $region6: #{tpu_custom_call.1} parent=1 // pred_check
      _
    $region7: #{tpu_custom_call.1} parent=1 // pred_check_branch
      %25 = sbr.rel (0) target = $region9
    $region8: #{tpu_custom_call.1} parent=1 // pred_region
      %26 = dma.done [#allocation4], 256
    $region9: #{tpu_custom_call.1} parent=1 // pred_fallthru
      _
    %s27 = sadd.s32 0, 0
    %p28 = scmp.lt.s32.totalorder %s27, 0
    %s29 = scalar_select %p28, %s27, 0
    %s30 = smul.u32 2, %s29
    %p31 = scmp.eq.s32.totalorder 0, 0
    // Predicated region
    $region10: #{tpu_custom_call.1} parent=1 // pred_check
      %p32 = pneg %p31
    $region11: #{tpu_custom_call.1} parent=1 // pred_check_branch
      %34 = sbr.rel (%p32) target = $region13
    $region12: #{tpu_custom_call.1} parent=1 // pred_region
      %vm35 = vcmask 64512
      %36 = vst.msk [vmem:[#allocation2] sm:$0xff] %vm35, 0.0
    $region13: #{tpu_custom_call.1} parent=1 // pred_fallthru
      _
    %s37 = sadd.s32 0, 0
    %s38 = smul.u32 %s37, 256
    %s39 = ssub.s32 256, %s38
    %p40 = scmp.ge.s32.totalorder %s39, 256
    // Predicated region
    $region14: #{tpu_custom_call.1} parent=1 // pred_check
      %p41 = pneg %p40
    $region15: #{tpu_custom_call.1} parent=1 // pred_check_branch
      %43 = sbr.rel (%p41) target = $region17
    $region16: #{tpu_custom_call.1} parent=1 // pred_region
      %v44 = vld [vmem:[#allocation3] sm:$0xff]
      %v45 = vld [vmem:[#allocation3 + $0x8] sm:$0xff]
      %v46 = vld [vmem:[#allocation2] sm:$0xff]
      %47 = vmatprep.subr.mxu0 0.0
      %48 = vmatpush1.xpose.msra.mxu0 0.0
      %49 = vmatprep.subr.mxu0 0.0
      %50 = vmatpush1.xpose.msra.mxu0 0.0
      %51 = vmatprep.subr.mxu0 0.0
      %52 = vmatpush1.xpose.msra.mxu0 0.0
      %53 = vmatprep.subr.mxu0 0.0
      %54 = vmatpush1.xpose.msra.mxu0 0.0
      %55 = vmatprep.subr.mxu0 0.0
      %56 = vmatpush1.xpose.msra.mxu0 0.0
      %57 = vmatprep.subr.mxu0 0.0
      %58 = vmatpush1.xpose.msra.mxu0 0.0
      %59 = vmatprep.subr.mxu0 0.0
      %60 = vmatpush1.xpose.msra.mxu0 0.0
      %61 = vmatprep.subr.mxu0 0.0
      %62 = vmatpush1.xpose.msra.mxu0 0.0
      %63 = vmatprep.subr.mxu0 0.0
      %64 = vmatpush1.xpose.msra.mxu0 0.0
      %65 = vmatprep.subr.mxu0 0.0
      %66 = vmatpush1.xpose.msra.mxu0 0.0
      %67 = vmatprep.subr.mxu0 0.0
      %68 = vmatpush1.xpose.msra.mxu0 0.0
      %69 = vmatprep.subr.mxu0 0.0
      %70 = vmatpush1.xpose.msra.mxu0 0.0
      %71 = vmatprep.subr.mxu0 0.0
      %72 = vmatpush1.xpose.msra.mxu0 0.0
      %73 = vmatprep.subr.mxu0 0.0
      %74 = vmatpush1.xpose.msra.mxu0 0.0
      %75 = vmatprep.subr.mxu0 0.0
      %76 = vmatpush1.xpose.msra.mxu0 0.0
      %77 = vmatprep.subr.mxu0 %v45
      %78 = vmatpush1.xpose.msra.mxu0 %v44
      %79 = vmatprep.subr.mxu0 0.0
      %80 = vmatpush2.xpose.msra.mxu0 0.0
      %81 = vmatprep.subr.mxu0 0.0
      %82 = vmatpush2.xpose.msra.mxu0 0.0
      %83 = vmatprep.subr.mxu0 0.0
      %84 = vmatpush2.xpose.msra.mxu0 0.0
      %85 = vmatprep.subr.mxu0 0.0
      %86 = vmatpush2.xpose.msra.mxu0 0.0
      %87 = vmatprep.subr.mxu0 0.0
      %88 = vmatpush2.xpose.msra.mxu0 0.0
      %89 = vmatprep.subr.mxu0 0.0
      %90 = vmatpush2.xpose.msra.mxu0 0.0
      %91 = vmatprep.subr.mxu0 0.0
      %92 = vmatpush2.xpose.msra.mxu0 0.0
      %93 = vmatprep.subr.mxu0 0.0
      %94 = vmatpush2.xpose.msra.mxu0 0.0
      %95 = vmatprep.subr.mxu0 0.0
      %96 = vmatpush2.xpose.msra.mxu0 0.0
      %97 = vmatprep.subr.mxu0 0.0
      %98 = vmatpush2.xpose.msra.mxu0 0.0
      %99 = vmatprep.subr.mxu0 0.0
      %100 = vmatpush2.xpose.msra.mxu0 0.0
      %101 = vmatprep.subr.mxu0 0.0
      %102 = vmatpush2.xpose.msra.mxu0 0.0
      %103 = vmatprep.subr.mxu0 0.0
      %104 = vmatpush2.xpose.msra.mxu0 0.0
      %105 = vmatprep.subr.mxu0 0.0
      %106 = vmatpush2.xpose.msra.mxu0 0.0
      %107 = vmatprep.subr.mxu0 0.0
      %108 = vmatpush2.xpose.msra.mxu0 0.0
      %109 = vmatprep.subr.mxu0 0.0
      %110 = vmatpush2.xpose.msra.mxu0 0.0
      %111 = vmatprep.mubr.f32.mxu0 %v45
      %112 = vmatmul.mubr.f32.gmra.mxu0 %v44
      %v113 = vpop.f32.mrf.mxu0
      %v114 = vadd.f32 0.0, %v113
      %v115 = vpop.f32.mrf.mxu0
      %116 = vdwg.mxu0
      %v117 = vadd.f32 %v46, %v114
      %vm118 = vcmask 64512
      %119 = vst.msk [vmem:[#allocation2] sm:$0xff] %vm118, %v117
    $region17: #{tpu_custom_call.1} parent=1 // pred_fallthru
      _
    %p120 = scmp.lt.s32.totalorder %s39, 256
    // Predicated region
    $region18: #{tpu_custom_call.1} parent=1 // pred_check
      %p121 = pneg %p120
    $region19: #{tpu_custom_call.1} parent=1 // pred_check_branch
      %123 = sbr.rel (%p121) target = $region21
    $region20: #{tpu_custom_call.1} parent=1 // pred_region
      %v124 = vld [vmem:[#allocation3] sm:$0xff]
      %v125 = vld [vmem:[#allocation3 + $0x8] sm:$0xff]
      %v126 = vlaneseq
      %v127 = vand.u32 %v126, 127
      %v128 = vadd.s32 %v127, 128
      %v129 = vstv %s39
      %vm130 = vcmp.lt.s32.totalorder %v127, %v129
      %vm131 = vcmp.lt.s32.totalorder %v128, %v129
      %v132 = vsel %vm130, %v124, 0.0
      %v133 = vsel %vm131, %v125, 0.0
      %v134 = vld [vmem:[#allocation2] sm:$0xff]
      %135 = vmatprep.subr.mxu0 0.0
      %136 = vmatpush1.xpose.msra.mxu0 0.0
      %137 = vmatprep.subr.mxu0 0.0
      %138 = vmatpush1.xpose.msra.mxu0 0.0
      %139 = vmatprep.subr.mxu0 0.0
      %140 = vmatpush1.xpose.msra.mxu0 0.0
      %141 = vmatprep.subr.mxu0 0.0
      %142 = vmatpush1.xpose.msra.mxu0 0.0
      %143 = vmatprep.subr.mxu0 0.0
      %144 = vmatpush1.xpose.msra.mxu0 0.0
      %145 = vmatprep.subr.mxu0 0.0
      %146 = vmatpush1.xpose.msra.mxu0 0.0
      %147 = vmatprep.subr.mxu0 0.0
      %148 = vmatpush1.xpose.msra.mxu0 0.0
      %149 = vmatprep.subr.mxu0 0.0
      %150 = vmatpush1.xpose.msra.mxu0 0.0
      %151 = vmatprep.subr.mxu0 0.0
      %152 = vmatpush1.xpose.msra.mxu0 0.0
      %153 = vmatprep.subr.mxu0 0.0
      %154 = vmatpush1.xpose.msra.mxu0 0.0
      %155 = vmatprep.subr.mxu0 0.0
      %156 = vmatpush1.xpose.msra.mxu0 0.0
      %157 = vmatprep.subr.mxu0 0.0
      %158 = vmatpush1.xpose.msra.mxu0 0.0
      %159 = vmatprep.subr.mxu0 0.0
      %160 = vmatpush1.xpose.msra.mxu0 0.0
      %161 = vmatprep.subr.mxu0 0.0
      %162 = vmatpush1.xpose.msra.mxu0 0.0
      %163 = vmatprep.subr.mxu0 0.0
      %164 = vmatpush1.xpose.msra.mxu0 0.0
      %165 = vmatprep.subr.mxu0 %v133
      %166 = vmatpush1.xpose.msra.mxu0 %v132
      %167 = vmatprep.subr.mxu0 0.0
      %168 = vmatpush2.xpose.msra.mxu0 0.0
      %169 = vmatprep.subr.mxu0 0.0
      %170 = vmatpush2.xpose.msra.mxu0 0.0
      %171 = vmatprep.subr.mxu0 0.0
      %172 = vmatpush2.xpose.msra.mxu0 0.0
      %173 = vmatprep.subr.mxu0 0.0
      %174 = vmatpush2.xpose.msra.mxu0 0.0
      %175 = vmatprep.subr.mxu0 0.0
      %176 = vmatpush2.xpose.msra.mxu0 0.0
      %177 = vmatprep.subr.mxu0 0.0
      %178 = vmatpush2.xpose.msra.mxu0 0.0
      %179 = vmatprep.subr.mxu0 0.0
      %180 = vmatpush2.xpose.msra.mxu0 0.0
      %181 = vmatprep.subr.mxu0 0.0
      %182 = vmatpush2.xpose.msra.mxu0 0.0
      %183 = vmatprep.subr.mxu0 0.0
      %184 = vmatpush2.xpose.msra.mxu0 0.0
      %185 = vmatprep.subr.mxu0 0.0
      %186 = vmatpush2.xpose.msra.mxu0 0.0
      %187 = vmatprep.subr.mxu0 0.0
      %188 = vmatpush2.xpose.msra.mxu0 0.0
      %189 = vmatprep.subr.mxu0 0.0
      %190 = vmatpush2.xpose.msra.mxu0 0.0
      %191 = vmatprep.subr.mxu0 0.0
      %192 = vmatpush2.xpose.msra.mxu0 0.0
      %193 = vmatprep.subr.mxu0 0.0
      %194 = vmatpush2.xpose.msra.mxu0 0.0
      %195 = vmatprep.subr.mxu0 0.0
      %196 = vmatpush2.xpose.msra.mxu0 0.0
      %197 = vmatprep.subr.mxu0 0.0
      %198 = vmatpush2.xpose.msra.mxu0 0.0
      %199 = vmatprep.mubr.f32.mxu0 %v133
      %200 = vmatmul.mubr.f32.gmra.mxu0 %v132
      %v201 = vpop.f32.mrf.mxu0
      %v202 = vadd.f32 0.0, %v201
      %v203 = vpop.f32.mrf.mxu0
      %204 = vdwg.mxu0
      %v205 = vadd.f32 %v134, %v202
      %vm206 = vcmask 64512
      %207 = vst.msk [vmem:[#allocation2] sm:$0xff] %vm206, %v205
    $region21: #{tpu_custom_call.1} parent=1 // pred_fallthru
      _
    // Predicated region
    $region22: #{tpu_custom_call.1} parent=1 // pred_check
      %p208 = pneg %p31
    $region23: #{tpu_custom_call.1} parent=1 // pred_check_branch
      %210 = sbr.rel (%p208) target = $region25
    $region24: #{tpu_custom_call.1} parent=1 // pred_region
      %v211 = vld [vmem:[#allocation2] sm:$0xff]
      %vm212 = vcmask 64512
      %213 = vst.msk [vmem:[#allocation6] sm:$0xff] %vm212, %v211
    $region25: #{tpu_custom_call.1} parent=1 // pred_fallthru
      _
    // Predicated region
    $region26: #{tpu_custom_call.1} parent=1 // pred_check
      _
    $region27: #{tpu_custom_call.1} parent=1 // pred_check_branch
      %215 = sbr.rel (0) target = $region29
    $region28: #{tpu_custom_call.1} parent=1 // pred_region
      %s217 = ssub.s32 128, 128
      %218 = vsyncadd [#allocation5], %s217
      %s220 = sshll.u32 [#allocation6], 4
      %s221 = int_to_ptr.vmem [resolvable:$true] %s220
      %223 = dma.vmem_to_hbm [thread:$0]  %s221, 128, %s1, [#allocation5]
    $region29: #{tpu_custom_call.1} parent=1 // pred_fallthru
      _
    // Predicated region
    $region30: #{tpu_custom_call.1} parent=1 // pred_check
      _
    $region31: #{tpu_custom_call.1} parent=1 // pred_check_branch
      %225 = sbr.rel (0) target = $region33
    $region32: #{tpu_custom_call.1} parent=1 // pred_region
      %226 = dma.done [#allocation5], 128
    $region33: #{tpu_custom_call.1} parent=1 // pred_fallthru
      _
    %227 = vsyncpa [#allocation4], 1
    %228 = vsyncpa [#allocation5], 1

</llo_original>
